<compile_context>
chip_gen: v7x
topology: tpu7x:2x2x1
jax: 0.10.0
libtpu: 0.0.40
codegen_flags: <defaults>
</compile_context>

<pallas_src>
import functools
import math

import jax
import jax.numpy as jnp
import numpy as np
from jax.experimental import pallas as pl
from jax.experimental.pallas import tpu as pltpu

_LOG2E = 1.4426950408889634
_MASK = -1e30  # finite "minus infinity" for padded kv columns (avoids inf-inf NaNs)


def _round_up(a, b):
    return (a + b - 1) // b * b


def _layer_norm(v, g, b, eps=1e-5):
    mu = jnp.mean(v, axis=-1, keepdims=True)
    var = jnp.mean(jnp.square(v - mu), axis=-1, keepdims=True)
    return (v - mu) * jax.lax.rsqrt(var + eps) * g + b


# --------------------------------------------------------------------------
# Kernel 1: LN1 + fused QKV projection.   grid = (B, T_pad // TT)
# --------------------------------------------------------------------------
def _qkv_kernel(x_ref, ln1_ref, wqkv_ref, bqkv_ref, qkv_ref):
    x = x_ref[0]                                            # (TT, D) f32
    xn = _layer_norm(x, ln1_ref[0], ln1_ref[1])             # f32
    qkv = jnp.dot(xn.astype(jnp.bfloat16), wqkv_ref[...],   # bf16 x bf16 -> f32 acc
                  preferred_element_type=jnp.float32) + bqkv_ref[0]
    qkv_ref[0] = qkv.astype(qkv_ref.dtype)                  # lane-dense (TT, 3D)


# --------------------------------------------------------------------------
# Kernel 2: flash attention on the packed qkv tensor.
#   grid = (B, T_pad // TQ, T_pad // TK), kv axis last (reduction).
#   Heads are handled with a static lane-slice loop; the accumulator and the
#   HBM output are lane-dense (TQ, D).  q is pre-scaled by dh**-0.5 * log2(e).
# --------------------------------------------------------------------------
def _flash_attn_kernel(q_ref, k_ref, v_ref, o_ref, m_sc, l_sc, acc_sc,
                       *, n_head, d_head, t_real, t_pad, kv_tile):
    kv = pl.program_id(2)

    @pl.when(kv == 0)
    def _():
        m_sc[...] = jnp.full(m_sc.shape, _MASK, dtype=m_sc.dtype)
        l_sc[...] = jnp.zeros(l_sc.shape, dtype=l_sc.dtype)
        acc_sc[...] = jnp.zeros(acc_sc.shape, dtype=acc_sc.dtype)

    q = q_ref[0]                                            # (TQ, D) bf16 (pre-scaled)
    k = k_ref[0]                                            # (TK, D) bf16
    v = v_ref[0]                                            # (TK, D) bf16

    if t_pad != t_real:                                     # static: mask padded kv cols
        col = jax.lax.broadcasted_iota(jnp.int32, (1, kv_tile), 1) + kv * kv_tile
        kv_mask = col < t_real                              # (1, TK) bool
    else:
        kv_mask = None

    # Static unroll over heads; each head uses a static lane slice of q/k/v/acc.
    for h in range(n_head):
        sl = slice(h * d_head, (h + 1) * d_head)
        s = jax.lax.dot_general(q[:, sl], k[:, sl],
                                (((1,), (1,)), ((), ())),
                                preferred_element_type=jnp.float32)   # (TQ, TK) f32
        if kv_mask is not None:
            s = jnp.where(kv_mask, s, _MASK)
        m_prev = m_sc[h]                                              # (TQ, 1)
        m_new = jnp.maximum(m_prev, s.max(axis=-1, keepdims=True))
        alpha = jnp.exp2(m_prev - m_new)                              # EUP
        p = jnp.exp2(s - m_new)                                       # EUP, f32
        l_sc[h] = alpha * l_sc[h] + p.sum(axis=-1, keepdims=True)
        acc_sc[:, sl] = alpha * acc_sc[:, sl] + jnp.dot(
            p.astype(v.dtype), v[:, sl], preferred_element_type=jnp.float32)
        m_sc[h] = m_new

    @pl.when(kv == pl.num_programs(2) - 1)
    def _():
        for h in range(n_head):                             # normalize in VMEM (cheap)
            sl = slice(h * d_head, (h + 1) * d_head)
            inv_l = pl.reciprocal(l_sc[h], approx=True)     # EUP, effectively free
            acc_sc[:, sl] = acc_sc[:, sl] * inv_l
        o_ref[0] = acc_sc[...].astype(o_ref.dtype)          # single lane-dense store


# --------------------------------------------------------------------------
# Kernel 3: out-projection + residual + LN2 + MLP (hidden dim tiled) + residual.
#   grid = (B, T_pad // TT, n_mlp // TM), hidden-chunk axis last (reduction).
# --------------------------------------------------------------------------
def _proj_mlp_kernel(ctx_ref, x_ref, wo_ref, bo_ref, ln2_ref,
                     w1_ref, b1_ref, w2_ref, b2_ref, o_ref,
                     x1_sc, yn_sc, acc_sc):
    m = pl.program_id(2)

    @pl.when(m == 0)
    def _():
        attn = jnp.dot(ctx_ref[0], wo_ref[...],
                       preferred_element_type=jnp.float32) + bo_ref[0]
        x1 = x_ref[0] + attn                                # (TT, D) f32
        x1_sc[...] = x1
        yn_sc[...] = _layer_norm(x1, ln2_ref[0], ln2_ref[1]).astype(yn_sc.dtype)
        acc_sc[...] = jnp.zeros(acc_sc.shape, dtype=acc_sc.dtype)

    h = jnp.dot(yn_sc[...], w1_ref[...],                    # (TT, TM) f32
                preferred_element_type=jnp.float32) + b1_ref[0]
    h = jax.nn.gelu(h, approximate=False)                   # PyTorch nn.GELU() exact erf
    acc_sc[...] += jnp.dot(h.astype(jnp.bfloat16), w2_ref[...],
                           preferred_element_type=jnp.float32)

    @pl.when(m == pl.num_programs(2) - 1)
    def _():
        o_ref[0] = (x1_sc[...] + acc_sc[...] + b2_ref[0]).astype(o_ref.dtype)


# --------------------------------------------------------------------------
# Wrapper
# --------------------------------------------------------------------------
def residual_attention_block(x, params, n_head, *, q_tile=256, kv_tile=512,
                             t_tile=256, mlp_tile=1024):
    """x: (B, T, D) float32.  params: dict of f32 weights (see __main__)."""
    B, T, D = x.shape
    assert D % n_head == 0
    dh = D // n_head
    n_mlp = 4 * D
    # Lane-splitting the fused (.., 3D) qkv tensor requires D % 128 == 0 — true for
    # every Whisper size (384/512/768/1024/1280).
    assert D % 128 == 0, "n_state must be a multiple of 128"

    f32, bf16 = jnp.float32, jnp.bfloat16

    # ---- tile sizes (sublane aligned), clamped for small shapes ------------
    t8 = _round_up(T, 8)
    TT = min(t_tile, t8)
    TQ = min(q_tile, t8)
    TK = min(kv_tile, t8)
    for v in (TT, TQ, TK):
        assert v % 8 == 0, "tile sizes must be multiples of 8"
    T_pad = _round_up(T, math.lcm(TT, TQ, TK))
    TM = min(mlp_tile, n_mlp)
    assert n_mlp % TM == 0 and (TM == n_mlp or TM % 128 == 0)

    # ---- weight prep --------------------------------------------------------
    # Fold the two dh**-0.25 factors plus log2(e) (for exp2 softmax) into Wq/bq:
    # a single exact linear rescale of the q projection.
    qscale = (float(dh) ** -0.5) * _LOG2E
    wqkv = jnp.concatenate(
        [params["wq"] * qscale, params["wk"], params["wv"]], axis=1).astype(bf16)
    bqkv = jnp.concatenate(
        [params["bq"] * qscale, jnp.zeros((1, D), f32), params["bv"]],
        axis=1).astype(f32)                                  # key has no bias
    ln1 = jnp.concatenate([params["ln1_g"], params["ln1_b"]], axis=0).astype(f32)
    ln2 = jnp.concatenate([params["ln2_g"], params["ln2_b"]], axis=0).astype(f32)
    wo = params["wo"].astype(bf16)
    w1 = params["w1"].astype(bf16)
    w2 = params["w2"].astype(bf16)
    bo = params["bo"].astype(f32)
    b1 = params["b1"].astype(f32)
    b2 = params["b2"].astype(f32)

    x = x.astype(f32)
    x_p = jnp.pad(x, ((0, 0), (0, T_pad - T), (0, 0))) if T_pad != T else x

    # ---- helpers -------------------------------------------------------------
    def _const_spec(shape):
        # Constant-index block: nothing to prefetch -> single-buffer it.
        idx = lambda *args, n=len(shape): (0,) * n
        try:
            return pl.BlockSpec(shape, idx, pipeline_mode=pl.Buffered(1))
        except TypeError:  # older jax without pipeline_mode: fall back gracefully
            return pl.BlockSpec(shape, idx)

    def _nbytes(shape, dtype, bufs=2):
        return int(np.prod(shape)) * np.dtype(dtype).itemsize * bufs

    def _cparams(sem, buf_bytes):
        # Per-kernel scoped-VMEM limit sized from actual buffers (+50% headroom for
        # compiler temporaries / spills), capped so it is valid on v5e/v6e/v7x.
        need = sum(buf_bytes) * 3 // 2 + (4 << 20)
        limit = int(min(max(need, 32 << 20), 64 << 20))
        return pltpu.CompilerParams(dimension_semantics=sem, vmem_limit_bytes=limit)

    # ---- kernel 1: LN1 + fused QKV projection --------------------------------
    k1_bytes = [
        _nbytes((1, TT, D), f32),
        _nbytes((2, D), f32, 1),
        _nbytes((D, 3 * D), bf16, 1),
        _nbytes((1, 3 * D), f32, 1),
        _nbytes((1, TT, 3 * D), bf16),
    ]
    qkv = pl.pallas_call(
        _qkv_kernel,
        out_shape=jax.ShapeDtypeStruct((B, T_pad, 3 * D), bf16),
        grid=(B, T_pad // TT),
        in_specs=[
            pl.BlockSpec((1, TT, D), lambda b, t: (b, t, 0)),
            _const_spec((2, D)),
            _const_spec((D, 3 * D)),
            _const_spec((1, 3 * D)),
        ],
        out_specs=pl.BlockSpec((1, TT, 3 * D), lambda b, t: (b, t, 0)),
        compiler_params=_cparams(("parallel", "parallel"), k1_bytes),
    )(x_p, ln1, wqkv, bqkv)

    # ---- kernel 2: flash attention directly on packed qkv --------------------
    attn_kernel = functools.partial(
        _flash_attn_kernel, n_head=n_head, d_head=dh,
        t_real=T, t_pad=T_pad, kv_tile=TK)
    k2_bytes = [
        _nbytes((1, TQ, D), bf16),            # q tile
        _nbytes((1, TK, D), bf16),            # k tile
        _nbytes((1, TK, D), bf16),            # v tile
        _nbytes((1, TQ, D), bf16),            # out tile
        _nbytes((n_head, TQ, 1), f32, 1) * 2, # m, l scratch
        _nbytes((TQ, D), f32, 1),             # acc scratch
        _nbytes((TQ, TK), f32, 1),            # per-head score temporaries / spill
    ]
    ctx = pl.pallas_call(
        attn_kernel,
        out_shape=jax.ShapeDtypeStruct((B, T_pad, D), bf16),
        grid=(B, T_pad // TQ, T_pad // TK),
        in_specs=[
            pl.BlockSpec((1, TQ, D), lambda b, qi, ki: (b, qi, 0)),  # q third of qkv
            pl.BlockSpec((1, TK, D), lambda b, qi, ki: (b, ki, 1)),  # k third
            pl.BlockSpec((1, TK, D), lambda b, qi, ki: (b, ki, 2)),  # v third
        ],
        out_specs=pl.BlockSpec((1, TQ, D), lambda b, qi, ki: (b, qi, 0)),
        scratch_shapes=[
            pltpu.VMEM((n_head, TQ, 1), f32),   # running max m (per head)
            pltpu.VMEM((n_head, TQ, 1), f32),   # running denom l (per head)
            pltpu.VMEM((TQ, D), f32),           # lane-dense context accumulator
        ],
        compiler_params=_cparams(("parallel", "parallel", "arbitrary"), k2_bytes),
    )(qkv, qkv, qkv)

    # ---- kernel 3: out-proj + residual + LN2 + tiled MLP + residual -----------
    k3_bytes = [
        _nbytes((1, TT, D), bf16),            # ctx tile
        _nbytes((1, TT, D), f32),             # residual x tile
        _nbytes((D, D), bf16, 1),             # Wo (single-buffered)
        _nbytes((1, D), f32, 1),              # bo
        _nbytes((2, D), f32, 1),              # ln2
        _nbytes((D, TM), bf16),               # W1 chunk (streams)
        _nbytes((1, TM), f32),                # b1 chunk
        _nbytes((TM, D), bf16),               # W2 chunk (streams)
        _nbytes((1, D), f32, 1),              # b2
        _nbytes((1, TT, D), f32),             # out tile
        _nbytes((TT, D), f32, 1) * 2 + _nbytes((TT, D), bf16, 1),  # scratches
        _nbytes((TT, TM), f32, 1),            # GELU chunk temporaries
    ]
    out = pl.pallas_call(
        _proj_mlp_kernel,
        out_shape=jax.ShapeDtypeStruct((B, T_pad, D), f32),
        grid=(B, T_pad // TT, n_mlp // TM),
        in_specs=[
            pl.BlockSpec((1, TT, D), lambda b, t, m: (b, t, 0)),   # attention context
            pl.BlockSpec((1, TT, D), lambda b, t, m: (b, t, 0)),   # residual x
            _const_spec((D, D)),                                   # Wo
            _const_spec((1, D)),                                   # bo
            _const_spec((2, D)),                                   # ln2 gamma/beta
            pl.BlockSpec((D, TM), lambda b, t, m: (0, m)),         # W1 chunk
            pl.BlockSpec((1, TM), lambda b, t, m: (0, m)),         # b1 chunk
            pl.BlockSpec((TM, D), lambda b, t, m: (m, 0)),         # W2 chunk
            _const_spec((1, D)),                                   # b2
        ],
        out_specs=pl.BlockSpec((1, TT, D), lambda b, t, m: (b, t, 0)),
        scratch_shapes=[
            pltpu.VMEM((TT, D), f32),     # x1 = x + attn (residual carrier)
            pltpu.VMEM((TT, D), bf16),    # LN2(x1), MXU-ready
            pltpu.VMEM((TT, D), f32),     # MLP output accumulator
        ],
        compiler_params=_cparams(("parallel", "parallel", "arbitrary"), k3_bytes),
    )(ctx, x_p, wo, bo, ln2, w1, b1, w2, b2)

    return out[:, :T, :] if T_pad != T else out


# --------------------------------------------------------------------------
# Pure-JAX (f32) mirror of the PyTorch forward, for verification.
# --------------------------------------------------------------------------
def reference(x, p, n_head):
    B, T, D = x.shape
    dh = D // n_head
    scale = float(dh) ** -0.25

    xn = _layer_norm(x, p["ln1_g"][0], p["ln1_b"][0])
    q = xn @ p["wq"] + p["bq"][0]
    k = xn @ p["wk"]
    v = xn @ p["wv"] + p["bv"][0]
    qh = q.reshape(B, T, n_head, dh).transpose(0, 2, 1, 3) * scale
    kh = k.reshape(B, T, n_head, dh).transpose(0, 2, 3, 1) * scale
    vh = v.reshape(B, T, n_head, dh).transpose(0, 2, 1, 3)
    w = jax.nn.softmax(qh @ kh, axis=-1)
    wv = (w @ vh).transpose(0, 2, 1, 3).reshape(B, T, D)
    x = x + wv @ p["wo"] + p["bo"][0]

    yn = _layer_norm(x, p["ln2_g"][0], p["ln2_b"][0])
    y = yn @ p["w1"] + p["b1"][0]
    y = jax.nn.gelu(y, approximate=False)
    y = y @ p["w2"] + p["b2"][0]
    return x + y


if __name__ == "__main__":
    D, H = 128, 4                      # n_state, n_head (small but lane-legal: D % 128 == 0)
    n_mlp = 4 * D

    key = jax.random.PRNGKey(0)
    ks = jax.random.split(key, 17)

    def rnd(k, shape, s=0.05):
        return (s * jax.random.normal(k, shape)).astype(jnp.float32)

    params = {
        "ln1_g": (1.0 + rnd(ks[0], (1, D), 0.1)),
        "ln1_b": rnd(ks[1], (1, D)),
        "wq": rnd(ks[2], (D, D)),
        "bq": rnd(ks[3], (1, D)),
        "wk": rnd(ks[4], (D, D)),
        "wv": rnd(ks[5], (D, D)),
        "bv": rnd(ks[6], (1, D)),
        "wo": rnd(ks[7], (D, D)),
        "bo": rnd(ks[8], (1, D)),
        "ln2_g": (1.0 + rnd(ks[9], (1, D), 0.1)),
        "ln2_b": rnd(ks[10], (1, D)),
        "w1": rnd(ks[11], (D, n_mlp)),
        "b1": rnd(ks[12], (1, n_mlp)),
        "w2": rnd(ks[13], (n_mlp, D)),
        "b2": rnd(ks[14], (1, D)),
    }

    # bf16 MXU operands + approx reciprocal => looser tolerance vs the f32 reference.
    RTOL = ATOL = 2e-2

    # Test 1: single-tile path (B=2, T=8), default (clamped) tiles.
    x1 = jax.random.normal(ks[15], (2, 8, D), dtype=jnp.float32)
    out1 = jax.block_until_ready(residual_attention_block(x1, params, H))
    ref1 = jax.block_until_ready(reference(x1, params, H))
    np.testing.assert_allclose(np.asarray(out1), np.asarray(ref1), rtol=RTOL, atol=ATOL)

    # Test 2: T=20 with tiles of 8 -> T padded to 24; exercises the multi-tile online
    # softmax, masked padded kv columns, MLP hidden-dim accumulation and unpadding.
    x2 = jax.random.normal(ks[16], (2, 20, D), dtype=jnp.float32)
    out2 = jax.block_until_ready(
        residual_attention_block(x2, params, H,
                                 q_tile=8, kv_tile=8, t_tile=8, mlp_tile=128))
    ref2 = jax.block_until_ready(reference(x2, params, H))
    np.testing.assert_allclose(np.asarray(out2), np.asarray(ref2), rtol=RTOL, atol=ATOL)

    print("KERNEL_OK")
</pallas_src>

<mosaic_0001>
module attributes {stable_mosaic.version = 11 : i64} {
  func.func @_qkv_kernel(%arg0: i32, %arg1: i32, %arg2: memref<1x8x128xf32, #tpu.memory_space<vmem>>, %arg3: memref<2x128xf32, #tpu.memory_space<vmem>>, %arg4: memref<128x384xbf16, #tpu.memory_space<vmem>>, %arg5: memref<1x384xf32, #tpu.memory_space<vmem>>, %arg6: memref<1x8x384xbf16, #tpu.memory_space<vmem>>) attributes {dimension_semantics = [#tpu.dimension_semantics<parallel>, #tpu.dimension_semantics<parallel>], iteration_bounds = array<i64: 2, 1>, scalar_prefetch = 0 : i64, scratch_operands = 0 : i64, tpu.core_type = #tpu.core_type<tc>, window_params = [{transform_indices = @transform_0, window_bounds = array<i64: 1, 8, 128>}, {pipeline_mode = #tpu.pipeline_mode<synchronous>, transform_indices = @transform_1, window_bounds = array<i64: 2, 128>}, {pipeline_mode = #tpu.pipeline_mode<synchronous>, transform_indices = @transform_2, window_bounds = array<i64: 128, 384>}, {pipeline_mode = #tpu.pipeline_mode<synchronous>, transform_indices = @transform_3, window_bounds = array<i64: 1, 384>}, {transform_indices = @transform_4, window_bounds = array<i64: 1, 8, 384>}]} {
    %c0 = arith.constant 0 : index
    %c0_0 = arith.constant 0 : index
    %c0_1 = arith.constant 0 : index
    %0 = vector.load %arg2[%c0, %c0_0, %c0_1] : memref<1x8x128xf32, #tpu.memory_space<vmem>>, vector<1x8x128xf32>
    %1 = vector.shape_cast %0 : vector<1x8x128xf32> to vector<8x128xf32>
    %c0_2 = arith.constant 0 : index
    %c0_3 = arith.constant 0 : index
    %2 = vector.load %arg3[%c0_2, %c0_3] : memref<2x128xf32, #tpu.memory_space<vmem>>, vector<1x128xf32>
    %3 = vector.shape_cast %2 : vector<1x128xf32> to vector<128xf32>
    %c1 = arith.constant 1 : index
    %c0_4 = arith.constant 0 : index
    %4 = vector.load %arg3[%c1, %c0_4] : memref<2x128xf32, #tpu.memory_space<vmem>>, vector<1x128xf32>
    %5 = vector.shape_cast %4 : vector<1x128xf32> to vector<128xf32>
    %cst = arith.constant dense<0.000000e+00> : vector<8xf32>
    %6 = vector.multi_reduction <add>, %1, %cst [1] : vector<8x128xf32> to vector<8xf32>
    %7 = vector.shape_cast %6 : vector<8xf32> to vector<8x1xf32>
    %cst_5 = arith.constant 1.280000e+02 : f32
    %8 = vector.broadcast %cst_5 : f32 to vector<8x1xf32>
    %9 = arith.divf %7, %8 : vector<8x1xf32>
    %10 = vector.broadcast %9 : vector<8x1xf32> to vector<8x128xf32>
    %11 = arith.subf %1, %10 : vector<8x128xf32>
    %12 = arith.mulf %11, %11 : vector<8x128xf32>
    %cst_6 = arith.constant dense<0.000000e+00> : vector<8xf32>
    %13 = vector.multi_reduction <add>, %12, %cst_6 [1] : vector<8x128xf32> to vector<8xf32>
    %14 = vector.shape_cast %13 : vector<8xf32> to vector<8x1xf32>
    %cst_7 = arith.constant 1.280000e+02 : f32
    %15 = vector.broadcast %cst_7 : f32 to vector<8x1xf32>
    %16 = arith.divf %14, %15 : vector<8x1xf32>
    %17 = vector.broadcast %9 : vector<8x1xf32> to vector<8x128xf32>
    %18 = arith.subf %1, %17 : vector<8x128xf32>
    %cst_8 = arith.constant 9.99999974E-6 : f32
    %19 = vector.broadcast %cst_8 : f32 to vector<8x1xf32>
    %20 = arith.addf %16, %19 : vector<8x1xf32>
    %21 = math.rsqrt %20 : vector<8x1xf32>
    %22 = vector.broadcast %21 : vector<8x1xf32> to vector<8x128xf32>
    %23 = arith.mulf %18, %22 : vector<8x128xf32>
    %24 = vector.shape_cast %3 : vector<128xf32> to vector<1x128xf32>
    %25 = vector.broadcast %24 : vector<1x128xf32> to vector<8x128xf32>
    %26 = arith.mulf %23, %25 : vector<8x128xf32>
    %27 = vector.shape_cast %5 : vector<128xf32> to vector<1x128xf32>
    %28 = vector.broadcast %27 : vector<1x128xf32> to vector<8x128xf32>
    %29 = arith.addf %26, %28 : vector<8x128xf32>
    %30 = arith.truncf %29 : vector<8x128xf32> to vector<8x128xbf16>
    %c0_9 = arith.constant 0 : index
    %c0_10 = arith.constant 0 : index
    %31 = vector.load %arg4[%c0_9, %c0_10] : memref<128x384xbf16, #tpu.memory_space<vmem>>, vector<128x384xbf16>
    %cst_11 = arith.constant dense<0.000000e+00> : vector<8x384xf32>
    %32 = tpu.matmul %30, %31, %cst_11 {dimension_numbers = #tpu.dot_dimension_numbers<[1], [0], [0], [1], [0, 0, 1, 1], [], []>} : vector<8x128xbf16>, vector<128x384xbf16>, vector<8x384xf32> -> vector<8x384xf32>
    %c0_12 = arith.constant 0 : index
    %c0_13 = arith.constant 0 : index
    %33 = vector.load %arg5[%c0_12, %c0_13] : memref<1x384xf32, #tpu.memory_space<vmem>>, vector<1x384xf32>
    %34 = vector.shape_cast %33 : vector<1x384xf32> to vector<384xf32>
    %35 = vector.shape_cast %34 : vector<384xf32> to vector<1x384xf32>
    %36 = vector.broadcast %35 : vector<1x384xf32> to vector<8x384xf32>
    %37 = arith.addf %32, %36 : vector<8x384xf32>
    %38 = arith.truncf %37 : vector<8x384xf32> to vector<8x384xbf16>
    %c0_14 = arith.constant 0 : index
    %c0_15 = arith.constant 0 : index
    %c0_16 = arith.constant 0 : index
    %39 = vector.load %arg6[%c0_14, %c0_15, %c0_16] : memref<1x8x384xbf16, #tpu.memory_space<vmem>>, vector<1x8x384xbf16>
    %40 = vector.shape_cast %39 : vector<1x8x384xbf16> to vector<8x384xbf16>
    %41 = vector.shape_cast %38 : vector<8x384xbf16> to vector<1x8x384xbf16>
    tpu.vector_store %arg6[%c0_14, %c0_15, %c0_16], %41 {strides = array<i32>} : memref<1x8x384xbf16, #tpu.memory_space<vmem>>, vector<1x8x384xbf16>,
    return
  }
  func.func @transform_0(%arg0: i32, %arg1: i32) -> (i32, i32, i32) {
    %c0_i32 = arith.constant 0 : i32
    %c0_i32_0 = arith.constant 0 : i32
    return %arg0, %arg1, %c0_i32 : i32, i32, i32
  }
  func.func @transform_1(%arg0: i32, %arg1: i32) -> (i32, i32) {
    %c0_i32 = arith.constant 0 : i32
    %c0_i32_0 = arith.constant 0 : i32
    %c0_i32_1 = arith.constant 0 : i32
    return %c0_i32, %c0_i32_0 : i32, i32
  }
  func.func @transform_2(%arg0: i32, %arg1: i32) -> (i32, i32) {
    %c0_i32 = arith.constant 0 : i32
    %c0_i32_0 = arith.constant 0 : i32
    %c0_i32_1 = arith.constant 0 : i32
    return %c0_i32, %c0_i32_0 : i32, i32
  }
  func.func @transform_3(%arg0: i32, %arg1: i32) -> (i32, i32) {
    %c0_i32 = arith.constant 0 : i32
    %c0_i32_0 = arith.constant 0 : i32
    %c0_i32_1 = arith.constant 0 : i32
    return %c0_i32, %c0_i32_0 : i32, i32
  }
  func.func @transform_4(%arg0: i32, %arg1: i32) -> (i32, i32, i32) {
    %c0_i32 = arith.constant 0 : i32
    %c0_i32_0 = arith.constant 0 : i32
    return %arg0, %arg1, %c0_i32 : i32, i32, i32
  }
}

</mosaic_0001>

<llo_original>
// kernel: tpu_custom_call.1
$region0: #{tpu_custom_call.1}
  #allocation0 [shape = 'u32[]', space=smem, size = 0x4, offset = 0x4, fixed_abs, tag = 'smem constant byte address 0x4 - core index']
  #allocation1 [shape = 'u32[144,128]{1,0:T(1,128)}', space=vmem, size = 0x12000, scoped, tag = 'internal scratch']
  %s0 = inlined_call_operand.hbm [shape: f32[2,8,128], index: 0, kind: input, shape index: {}]
  %s1 = inlined_call_operand.vmem [shape: f32[2,128], index: 1, kind: input, shape index: {}]
  %s2 = inlined_call_operand.hbm [shape: bf16[128,384], index: 2, kind: input, shape index: {}]
  %s3 = inlined_call_operand.vmem [shape: f32[1,384], index: 3, kind: input, shape index: {}]
  %s4 = inlined_call_operand.hbm [shape: bf16[2,8,384], index: 4, kind: output, shape index: {}]
  %s5 = sld [smem:[#allocation0]]
  $region57: #{tpu_custom_call.1} parent=0
    _
  %s7 = ssub.s32 1, %s5
  %s8 = scalar_select 0, %s7, %s5
  $region1: #{tpu_custom_call.1} parent=0
    #allocation2 [shape = 'u8[8192]{0}', space=vmem, size = 0x2000, scoped, tag = 'input window, operand 0']
    #allocation3 [shape = 's32[2]{0}', space=sflag, size = 0x8, scoped, tag = 'scoped memory for tpu_custom_call.1']
    #allocation4 [shape = 's32[2]{0}', space=sflag, size = 0x8, scoped, tag = 'scoped memory for tpu_custom_call.1']
    #allocation5 [shape = 'u8[98304]{0}', space=vmem, size = 0x18000, scoped, tag = 'input window, operand 2, single buffered']
    #allocation6 [shape = 's32[1]{0}', space=sflag, size = 0x4, scoped, tag = 'scoped memory for tpu_custom_call.1']
    #allocation7 [shape = 'u8[12288]{0}', space=vmem, size = 0x3000, scoped, tag = 'output window, operand 0']
    %9 = vsyncpa [#allocation3], 0
    %s10 = scalar_lea.sflag [#allocation3], 1
    %11 = vsyncpa %s10, 0
    %12 = vsyncpa [#allocation6], 0
    %13 = vsyncpa [#allocation4], 0
    %s14 = scalar_lea.sflag [#allocation4], 1
    %15 = vsyncpa %s14, 0
    loop: start=0, step=1, limit=4
    $region2: #{tpu_custom_call.1} parent=1 // loop_pre_header
      _
    $region3: #{tpu_custom_call.1} parent=1 // loop_header
      %s17 = sphi 0, %s21
      %p18 = scmp.ge.s32.totalorder %s17, 4
      %s24 = sphi 0, %s36
      %s25 = sphi 0, %s32
      %s26 = sphi 0, %s24
      %s27 = sphi 0, %s25
      %s28 = sphi 0, %s26
      %s29 = sphi 0, %s27
      %s41 = sphi 0, %s43
      %s44 = sphi 0, %s41
      %s45 = sphi 0, %s44
      %s61 = sphi 0, %s45
      %s65 = sphi 0, %s65
      %s67 = sphi 0, %s65
      %s68 = sphi 0, %s67
      %s82 = sphi 0, %s68
      %s86 = sphi 0, %s86
      %s88 = sphi 0, %s86
      %s89 = sphi 0, %s88
      %s103 = sphi 0, %s89
      %s107 = sphi 0, %s107
      %s109 = sphi 0, %s107
      %s110 = sphi 0, %s109
      %s124 = sphi 0, %s110
      %s132 = sphi 0, %s134
      %s135 = sphi 0, %s132
      %s136 = sphi 0, %s135
      %s152 = sphi 0, %s136
    $region4: #{tpu_custom_call.1} parent=1 // loop_header_branch
      %20 = sbr.rel (%p18) target = $region8
    $region5: #{tpu_custom_call.1} parent=1 // loop_body
      %s22 = ssub.s32 %s17, 1
      %s23 = ssub.s32 %s17, 2
      %s30 = sadd.s32 1, %s25
      %p31 = scmp.ge.s32.totalorder %s30, 1
      %s32 = scalar_select %p31, 0, %s30
      %s33 = sadd.s32 1, %s24
      %s34 = scalar_select %p31, %s33, %s24
      %p35 = scmp.ge.s32.totalorder %s34, 2
      %s36 = scalar_select %p35, 0, %s34
      %s37 = ssub.s32 %s24, %s36
      %s38 = ssub.s32 %s25, %s32
      %s39 = sor.u32 %s37, %s38
      %p40 = scmp.eq.s32.totalorder %s39, 0
      %s42 = sadd.s32 %s41, 1
      %s43 = scalar_select %p40, %s41, %s42
      %p46 = pneg %p40
      %p47 = scmp.eq.s32.totalorder %s17, 1
      %p48 = por %p46, %p47
      %p49 = scmp.ne.s32.totalorder %s41, %s44
      %p50 = scmp.eq.s32.totalorder %s17, 0
      %p51 = por %p49, %p50
      %p52 = scmp.ne.s32.totalorder %s41, %s44
      %p53 = scmp.eq.s32.totalorder %s22, 1
      %p54 = por %p52, %p53
      %p55 = scmp.ne.s32.totalorder %s44, %s45
      %p56 = scmp.eq.s32.totalorder %s22, 0
      %p57 = por %p55, %p56
      %p58 = scmp.ne.s32.totalorder %s44, %s45
      %p59 = scmp.eq.s32.totalorder %s23, 1
      %p60 = por %p58, %p59
      %p62 = scmp.ne.s32.totalorder %s45, %s61
      %p63 = scmp.eq.s32.totalorder %s23, 0
      %p64 = por %p62, %p63
      %s66 = sadd.s32 %s65, 1
      %p69 = scmp.eq.s32.totalorder %s17, 1
      %p70 = scmp.ne.s32.totalorder %s65, %s67
      %p71 = scmp.eq.s32.totalorder %s17, 0
      %p72 = por %p70, %p71
      %p73 = scmp.ne.s32.totalorder %s65, %s67
      %p74 = scmp.eq.s32.totalorder %s22, 1
      %p75 = por %p73, %p74
      %p76 = scmp.ne.s32.totalorder %s67, %s68
      %p77 = scmp.eq.s32.totalorder %s22, 0
      %p78 = por %p76, %p77
      %p79 = scmp.ne.s32.totalorder %s67, %s68
      %p80 = scmp.eq.s32.totalorder %s23, 1
      %p81 = por %p79, %p80
      %p83 = scmp.ne.s32.totalorder %s68, %s82
      %p84 = scmp.eq.s32.totalorder %s23, 0
      %p85 = por %p83, %p84
      %s87 = sadd.s32 %s86, 1
      %p90 = scmp.eq.s32.totalorder %s17, 1
      %p91 = scmp.ne.s32.totalorder %s86, %s88
      %p92 = scmp.eq.s32.totalorder %s17, 0
      %p93 = por %p91, %p92
      %p94 = scmp.ne.s32.totalorder %s86, %s88
      %p95 = scmp.eq.s32.totalorder %s22, 1
      %p96 = por %p94, %p95
      %p97 = scmp.ne.s32.totalorder %s88, %s89
      %p98 = scmp.eq.s32.totalorder %s22, 0
      %p99 = por %p97, %p98
      %p100 = scmp.ne.s32.totalorder %s88, %s89
      %p101 = scmp.eq.s32.totalorder %s23, 1
      %p102 = por %p100, %p101
      %p104 = scmp.ne.s32.totalorder %s89, %s103
      %p105 = scmp.eq.s32.totalorder %s23, 0
      %p106 = por %p104, %p105
      %s108 = sadd.s32 %s107, 1
      %p111 = scmp.eq.s32.totalorder %s17, 1
      %p112 = scmp.ne.s32.totalorder %s107, %s109
      %p113 = scmp.eq.s32.totalorder %s17, 0
      %p114 = por %p112, %p113
      %p115 = scmp.ne.s32.totalorder %s107, %s109
      %p116 = scmp.eq.s32.totalorder %s22, 1
      %p117 = por %p115, %p116
      %p118 = scmp.ne.s32.totalorder %s109, %s110
      %p119 = scmp.eq.s32.totalorder %s22, 0
      %p120 = por %p118, %p119
      %p121 = scmp.ne.s32.totalorder %s109, %s110
      %p122 = scmp.eq.s32.totalorder %s23, 1
      %p123 = por %p121, %p122
      %p125 = scmp.ne.s32.totalorder %s110, %s124
      %p126 = scmp.eq.s32.totalorder %s23, 0
      %p127 = por %p125, %p126
      %s128 = ssub.s32 %s24, %s36
      %s129 = ssub.s32 %s25, %s32
      %s130 = sor.u32 %s128, %s129
      %p131 = scmp.eq.s32.totalorder %s130, 0
      %s133 = sadd.s32 %s132, 1
      %s134 = scalar_select %p131, %s132, %s133
      %p137 = pneg %p131
      %p138 = scmp.eq.s32.totalorder %s17, 1
      %p139 = por %p137, %p138
      %p140 = scmp.ne.s32.totalorder %s132, %s135
      %p141 = scmp.eq.s32.totalorder %s17, 0
      %p142 = por %p140, %p141
      %p143 = scmp.ne.s32.totalorder %s132, %s135
      %p144 = scmp.eq.s32.totalorder %s22, 1
      %p145 = por %p143, %p144
      %p146 = scmp.ne.s32.totalorder %s135, %s136
      %p147 = scmp.eq.s32.totalorder %s22, 0
      %p148 = por %p146, %p147
      %p149 = scmp.ne.s32.totalorder %s135, %s136
      %p150 = scmp.eq.s32.totalorder %s23, 1
      %p151 = por %p149, %p150
      %p153 = scmp.ne.s32.totalorder %s136, %s152
      %p154 = scmp.eq.s32.totalorder %s23, 0
      %p155 = por %p153, %p154
      %p156 = scmp.le.s32.totalorder 1, %s17
      %p157 = scmp.lt.s32.totalorder %s17, 3
      %p158 = pnand %p156, %p157
      %p159 = pneg %p158
      // Predicated region
      $region9: #{tpu_custom_call.1} parent=5 // pred_check
        _
      $region10: #{tpu_custom_call.1} parent=5 // pred_check_branch
        %161 = sbr.rel (%p158) target = $region12
      $region11: #{tpu_custom_call.1} parent=5 // pred_region
        %s162 = ssub.s32 %s17, 1
        // Predicated region
        $region13: #{tpu_custom_call.1} parent=11 // pred_check
          %p163 = pneg %p78
        $region14: #{tpu_custom_call.1} parent=11 // pred_check_branch
          %165 = sbr.rel (%p163) target = $region16
        $region15: #{tpu_custom_call.1} parent=11 // pred_region
          _
        $region16: #{tpu_custom_call.1} parent=11 // pred_fallthru
          _
        // Predicated region
        $region17: #{tpu_custom_call.1} parent=11 // pred_check
          %p166 = pneg %p99
        $region18: #{tpu_custom_call.1} parent=11 // pred_check_branch
          %168 = sbr.rel (%p166) target = $region20
        $region19: #{tpu_custom_call.1} parent=11 // pred_region
          %s170 = ssub.s32 3072, 3072
          %171 = vsyncadd [#allocation6], %s170
          %s172 = sshll.u32 [#allocation5], 4
          %s173 = int_to_ptr.vmem [resolvable:$true] %s172
          %178 = dma.hbm_to_vmem [thread:$0]  %s2, 3072, %s173, [#allocation6], 192, 192, 12
        $region20: #{tpu_custom_call.1} parent=11 // pred_fallthru
          _
        // Predicated region
        $region21: #{tpu_custom_call.1} parent=11 // pred_check
          %p179 = pneg %p120
        $region22: #{tpu_custom_call.1} parent=11 // pred_check_branch
          %181 = sbr.rel (%p179) target = $region24
        $region23: #{tpu_custom_call.1} parent=11 // pred_region
          _
        $region24: #{tpu_custom_call.1} parent=11 // pred_fallthru
          _
      $region12: #{tpu_custom_call.1} parent=5 // pred_fallthru
        _
      %p182 = scmp.lt.s32.totalorder %s17, 2
      // Predicated region
      $region25: #{tpu_custom_call.1} parent=5 // pred_check
        %p183 = pneg %p182
      $region26: #{tpu_custom_call.1} parent=5 // pred_check_branch
        %185 = sbr.rel (%p183) target = $region28
      $region27: #{tpu_custom_call.1} parent=5 // pred_region
        // Predicated region
        $region29: #{tpu_custom_call.1} parent=27 // pred_check
          %p186 = pneg %p51
        $region30: #{tpu_custom_call.1} parent=27 // pred_check_branch
          %188 = sbr.rel (%p186) target = $region32
        $region31: #{tpu_custom_call.1} parent=27 // pred_region
          %s189 = sand.u32 %s41, 1
          %s190 = scalar_lea.sflag [#allocation3], %s189
          %s191 = sand.u32 %s41, 1
          %s192 = smul.addr %s191, 8
          %s193 = scalar_lea.vmem [#allocation2], %s192
          %s195 = ssub.s32 128, 128
          %196 = vsyncadd %s190, %s195
          %s197 = sadd.s32 %s25, %s24
          %s198 = smul.addr %s197, 128
          %s199 = scalar_lea.hbm %s0, %s198
          %s201 = sshll.u32 %s193, 4
          %s202 = int_to_ptr.vmem [resolvable:$true] %s201
          %204 = dma.hbm_to_vmem [thread:$0]  %s199, 128, %s202, %s190
        $region32: #{tpu_custom_call.1} parent=27 // pred_fallthru
          _
      $region28: #{tpu_custom_call.1} parent=5 // pred_fallthru
        _
      %p205 = scmp.le.s32.totalorder 1, %s17
      %p206 = scmp.lt.s32.totalorder %s17, 3
      %p207 = pnand %p205, %p206
      %p208 = pneg %p207
      // Predicated region
      $region33: #{tpu_custom_call.1} parent=5 // pred_check
        _
      $region34: #{tpu_custom_call.1} parent=5 // pred_check_branch
        %210 = sbr.rel (%p207) target = $region36
      $region35: #{tpu_custom_call.1} parent=5 // pred_region
        %s211 = ssub.s32 %s17, 1
        %s212 = sand.u32 %s44, 1
        %s213 = scalar_lea.sflag [#allocation3], %s212
        %s214 = sand.u32 %s44, 1
        %s215 = smul.addr %s214, 8
        %s216 = scalar_lea.vmem [#allocation2], %s215
        // Predicated region
        $region37: #{tpu_custom_call.1} parent=35 // pred_check
          %p217 = pneg %p57
        $region38: #{tpu_custom_call.1} parent=35 // pred_check_branch
          %219 = sbr.rel (%p217) target = $region40
        $region39: #{tpu_custom_call.1} parent=35 // pred_region
          %220 = dma.done %s213, 128
        $region40: #{tpu_custom_call.1} parent=35 // pred_fallthru
          _
        // Predicated region
        $region41: #{tpu_custom_call.1} parent=35 // pred_check
          %p221 = pneg %p99
        $region42: #{tpu_custom_call.1} parent=35 // pred_check_branch
          %223 = sbr.rel (%p221) target = $region44
        $region43: #{tpu_custom_call.1} parent=35 // pred_region
          %224 = dma.done [#allocation6], 3072
        $region44: #{tpu_custom_call.1} parent=35 // pred_fallthru
          _
        %s225 = sand.u32 %s44, 1
        %s226 = scalar_lea.sflag [#allocation3], %s225
        %s227 = sand.u32 %s44, 1
        %s228 = smul.addr %s227, 8
        %s229 = scalar_lea.vmem [#allocation2], %s228
        %p230 = pneg %p57
        %p231 = pneg %p54
        %p232 = pneg %p78
        %p233 = pneg %p75
        %p234 = pneg %p99
        %p235 = pneg %p96
        %p236 = pneg %p120
        %p237 = pneg %p117
        %p238 = pneg %p148
        %p239 = pneg %p145
        %s240 = sand.u32 %s135, 1
        %s241 = scalar_lea.sflag [#allocation4], %s240
        %s242 = sand.u32 %s135, 1
        %s243 = smul.addr %s242, 12
        %s244 = scalar_lea.vmem [#allocation7], %s243
        %v246 = vld [vmem:[%s216] sm:$0xff]
        %v247 = vld [vmem:[%s1] sm:$0x1]
        %v248 = vld [vmem:[%s1 + $0x1] sm:$0x1]
        %249 = vadd.xlane.f32.xlu0 %v246
        %v250 = vpop.xlane.xlu0 %249
        %v251 = vrcp.pop 128.0
        %v252 = vmul.f32 %v250, %v251
        %v253 = vsub.f32 %v246, %v252
        %v254 = vmul.f32 %v253, %v253
        %255 = vadd.xlane.f32.xlu0 %v254
        %v256 = vpop.xlane.xlu0 %255
        %v257 = vmul.f32 %v256, %v251
        %v258 = vadd.f32 %v257, 1e-05
        %v259 = vrsqrt.pop %v258
        %v260 = vmul.f32 %v253, %v259
        %v261 = vlaneseq
        %v262 = vshrl.u32 %v261, 7
        %v263 = vsub.s32 0, %v262
        %v264 = vrot.slane %v247, %v263
        %v265 = vmul.f32 %v260, %v264
        %v266 = vlaneseq
        %v267 = vshrl.u32 %v266, 7
        %v268 = vsub.s32 0, %v267
        %v269 = vrot.slane %v248, %v268
        %v270 = vadd.f32 %v265, %v269
        %v271 = vpack.c.bf16 %v270, %v270
        %v272 = vld [vmem:[#allocation5] sm:$0xff]
        %v273 = vld [vmem:[#allocation5 + $0x8] sm:$0xf]
        %v274 = vld [vmem:[#allocation5 + $0xc] sm:$0xff]
        %v275 = vld [vmem:[#allocation5 + $0x14] sm:$0xf]
        %v276 = vld [vmem:[#allocation5 + $0x18] sm:$0xff]
        %v277 = vld [vmem:[#allocation5 + $0x20] sm:$0xf]
        %v278 = vld [vmem:[#allocation5 + $0x24] sm:$0xff]
        %v279 = vld [vmem:[#allocation5 + $0x2c] sm:$0xf]
        %v280 = vld [vmem:[#allocation5 + $0x30] sm:$0xff]
        %v281 = vld [vmem:[#allocation5 + $0x38] sm:$0xf]
        %v282 = vld [vmem:[#allocation5 + $0x3c] sm:$0xff]
        %v283 = vld [vmem:[#allocation5 + $0x44] sm:$0xf]
        %v284 = vld [vmem:[#allocation5 + $0x48] sm:$0xff]
        %v285 = vld [vmem:[#allocation5 + $0x50] sm:$0xf]
        %v286 = vld [vmem:[#allocation5 + $0x54] sm:$0xff]
        %v287 = vld [vmem:[#allocation5 + $0x5c] sm:$0xf]
        %v288 = vld [vmem:[#allocation5 + $0x60] sm:$0xff]
        %v289 = vld [vmem:[#allocation5 + $0x68] sm:$0xf]
        %v290 = vld [vmem:[#allocation5 + $0x6c] sm:$0xff]
        %v291 = vld [vmem:[#allocation5 + $0x74] sm:$0xf]
        %v292 = vld [vmem:[#allocation5 + $0x78] sm:$0xff]
        %v293 = vld [vmem:[#allocation5 + $0x80] sm:$0xf]
        %v294 = vld [vmem:[#allocation5 + $0x84] sm:$0xff]
        %v295 = vld [vmem:[#allocation5 + $0x8c] sm:$0xf]
        %v296 = vld [vmem:[#allocation5 + $0x90] sm:$0xff]
        %v297 = vld [vmem:[#allocation5 + $0x98] sm:$0xf]
        %v298 = vld [vmem:[#allocation5 + $0x9c] sm:$0xff]
        %v299 = vld [vmem:[#allocation5 + $0xa4] sm:$0xf]
        %v300 = vld [vmem:[#allocation5 + $0xa8] sm:$0xff]
        %v301 = vld [vmem:[#allocation5 + $0xb0] sm:$0xf]
        %v302 = vld [vmem:[#allocation5 + $0xb4] sm:$0xff]
        %v303 = vld [vmem:[#allocation5 + $0xbc] sm:$0xf]
        %v304 = vld [vmem:[%s3] sm:$0x7]
        %v306 = vlaneseq
        %v307 = vshrl.u32 %v306, 7
        %v308 = vsub.s32 0, %v307
        %v309 = vrot.slane %v304, %v308
        %v310 = vlaneseq
        %v311 = vshrl.u32 %v310, 7
        %v312 = vsub.s32 1, %v311
        %v313 = vrot.slane %v304, %v312
        %v314 = vlaneseq
        %v315 = vshrl.u32 %v314, 7
        %v316 = vsub.s32 2, %v315
        %v317 = vrot.slane %v304, %v316
        %v353 = vunpack.c.l.b16 %v272
        %v354 = vunpack.c.h.b16 %v272
        %v355 = vunpack.c.l.b16 %v273
        %v356 = vunpack.c.l.b16 %v274
        %v357 = vunpack.c.h.b16 %v274
        %v358 = vunpack.c.l.b16 %v275
        %v359 = vunpack.c.l.b16 %v276
        %v360 = vunpack.c.h.b16 %v276
        %v361 = vunpack.c.l.b16 %v277
        %v362 = vunpack.c.l.b16 %v278
        %v363 = vunpack.c.h.b16 %v278
        %v364 = vunpack.c.l.b16 %v279
        %v365 = vunpack.c.l.b16 %v280
        %v366 = vunpack.c.h.b16 %v280
        %v367 = vunpack.c.l.b16 %v281
        %v368 = vunpack.c.l.b16 %v282
        %v369 = vunpack.c.h.b16 %v282
        %v370 = vunpack.c.l.b16 %v283
        %v371 = vunpack.c.l.b16 %v284
        %v372 = vunpack.c.h.b16 %v284
        %v373 = vunpack.c.l.b16 %v285
        %v374 = vunpack.c.l.b16 %v286
        %v375 = vunpack.c.h.b16 %v286
        %v376 = vunpack.c.l.b16 %v287
        %v377 = vunpack.c.l.b16 %v288
        %v378 = vunpack.c.h.b16 %v288
        %v379 = vunpack.c.l.b16 %v289
        %v380 = vunpack.c.l.b16 %v290
        %v381 = vunpack.c.h.b16 %v290
        %v382 = vunpack.c.l.b16 %v291
        %v383 = vunpack.c.l.b16 %v292
        %v384 = vunpack.c.h.b16 %v292
        %v385 = vunpack.c.l.b16 %v293
        %v386 = vunpack.c.l.b16 %v294
        %v387 = vunpack.c.h.b16 %v294
        %v388 = vunpack.c.l.b16 %v295
        %v389 = vunpack.c.l.b16 %v296
        %v390 = vunpack.c.h.b16 %v296
        %v391 = vunpack.c.l.b16 %v297
        %v392 = vunpack.c.l.b16 %v298
        %v393 = vunpack.c.h.b16 %v298
        %v394 = vunpack.c.l.b16 %v299
        %v395 = vunpack.c.l.b16 %v300
        %v396 = vunpack.c.h.b16 %v300
        %v397 = vunpack.c.l.b16 %v301
        %v398 = vunpack.c.l.b16 %v302
        %v399 = vunpack.c.h.b16 %v302
        %v400 = vunpack.c.l.b16 %v303
        %v401 = vpack.c.b16 %v356, %v353
        %v402 = vpack.c.b16 %v357, %v354
        %v403 = vpack.c.b16 %v358, %v355
        %v404 = vpack.c.b16 %v362, %v359
        %v405 = vpack.c.b16 %v363, %v360
        %v406 = vpack.c.b16 %v364, %v361
        %v407 = vpack.c.b16 %v368, %v365
        %v408 = vpack.c.b16 %v369, %v366
        %v409 = vpack.c.b16 %v370, %v367
        %v410 = vpack.c.b16 %v374, %v371
        %v411 = vpack.c.b16 %v375, %v372
        %v412 = vpack.c.b16 %v376, %v373
        %v413 = vpack.c.b16 %v380, %v377
        %v414 = vpack.c.b16 %v381, %v378
        %v415 = vpack.c.b16 %v382, %v379
        %v416 = vpack.c.b16 %v386, %v383
        %v417 = vpack.c.b16 %v387, %v384
        %v418 = vpack.c.b16 %v388, %v385
        %v419 = vpack.c.b16 %v392, %v389
        %v420 = vpack.c.b16 %v393, %v390
        %v421 = vpack.c.b16 %v394, %v391
        %v422 = vpack.c.b16 %v398, %v395
        %v423 = vpack.c.b16 %v399, %v396
        %v424 = vpack.c.b16 %v400, %v397
        %449 = vmatprep.subr.bf16.mxu0 %v402
        %450 = vmatpush1.bf16.msra.mxu0 %v401
        %451 = vmatprep.subr.bf16.mxu0 %v405
        %452 = vmatpush1.bf16.msra.mxu0 %v404
        %453 = vmatprep.subr.bf16.mxu0 %v408
        %454 = vmatpush1.bf16.msra.mxu0 %v407
        %455 = vmatprep.subr.bf16.mxu0 %v411
        %456 = vmatpush1.bf16.msra.mxu0 %v410
        %457 = vmatprep.subr.bf16.mxu0 %v414
        %458 = vmatpush1.bf16.msra.mxu0 %v413
        %459 = vmatprep.subr.bf16.mxu0 %v417
        %460 = vmatpush1.bf16.msra.mxu0 %v416
        %461 = vmatprep.subr.bf16.mxu0 %v420
        %462 = vmatpush1.bf16.msra.mxu0 %v419
        %463 = vmatprep.subr.bf16.mxu0 %v423
        %464 = vmatpush1.bf16.msra.mxu0 %v422
        %465 = vmatprep.subr.bf16.mxu0 0
        %466 = vmatpush1.bf16.msra.mxu0 0
        %467 = vmatprep.subr.bf16.mxu0 0
        %468 = vmatpush1.bf16.msra.mxu0 0
        %469 = vmatprep.subr.bf16.mxu0 0
        %470 = vmatpush1.bf16.msra.mxu0 0
        %471 = vmatprep.subr.bf16.mxu0 0
        %472 = vmatpush1.bf16.msra.mxu0 0
        %473 = vmatprep.subr.bf16.mxu0 0
        %474 = vmatpush1.bf16.msra.mxu0 0
        %475 = vmatprep.subr.bf16.mxu0 0
        %476 = vmatpush1.bf16.msra.mxu0 0
        %477 = vmatprep.subr.bf16.mxu0 0
        %478 = vmatpush1.bf16.msra.mxu0 0
        %479 = vmatprep.subr.bf16.mxu0 0
        %480 = vmatpush1.bf16.msra.mxu0 0
        %481 = vmatprep.mubr.bf16.mxu0 0
        %482 = vmatmul.mubr.bf16.gmra.mrb[0].mxu0 %v271
        %v483 = vpop.f32.mrb[0].mxu0
        %v484 = vadd.f32 %v309, %v483
        %v485 = vpop.f32.mrb[0].mxu0
        %v486 = vadd.f32 %v313, %v485
        %v487 = vpop.f32.mrb[0].mxu0
        %v488 = vpop.f32.mrb[0].mxu0
        %489 = vdwg.mxu0
        %490 = vmatprep.subr.bf16.mxu0 0
        %491 = vmatpush1.bf16.msra.mxu0 %v403
        %492 = vmatprep.subr.bf16.mxu0 0
        %493 = vmatpush1.bf16.msra.mxu0 %v406
        %494 = vmatprep.subr.bf16.mxu0 0
        %495 = vmatpush1.bf16.msra.mxu0 %v409
        %496 = vmatprep.subr.bf16.mxu0 0
        %497 = vmatpush1.bf16.msra.mxu0 %v412
        %498 = vmatprep.subr.bf16.mxu0 0
        %499 = vmatpush1.bf16.msra.mxu0 %v415
        %500 = vmatprep.subr.bf16.mxu0 0
        %501 = vmatpush1.bf16.msra.mxu0 %v418
        %502 = vmatprep.subr.bf16.mxu0 0
        %503 = vmatpush1.bf16.msra.mxu0 %v421
        %504 = vmatprep.subr.bf16.mxu0 0
        %505 = vmatpush1.bf16.msra.mxu0 %v424
        %506 = vmatprep.subr.bf16.mxu0 0
        %507 = vmatpush1.bf16.msra.mxu0 0
        %508 = vmatprep.subr.bf16.mxu0 0
        %509 = vmatpush1.bf16.msra.mxu0 0
        %510 = vmatprep.subr.bf16.mxu0 0
        %511 = vmatpush1.bf16.msra.mxu0 0
        %512 = vmatprep.subr.bf16.mxu0 0
        %513 = vmatpush1.bf16.msra.mxu0 0
        %514 = vmatprep.subr.bf16.mxu0 0
        %515 = vmatpush1.bf16.msra.mxu0 0
        %516 = vmatprep.subr.bf16.mxu0 0
        %517 = vmatpush1.bf16.msra.mxu0 0
        %518 = vmatprep.subr.bf16.mxu0 0
        %519 = vmatpush1.bf16.msra.mxu0 0
        %520 = vmatprep.subr.bf16.mxu0 0
        %521 = vmatpush1.bf16.msra.mxu0 0
        %522 = vmatprep.mubr.bf16.mxu0 0
        %523 = vmatmul.mubr.bf16.gmra.mrb[0].mxu0 %v271
        %v524 = vpop.f32.mrb[0].mxu0
        %v525 = vadd.f32 %v317, %v524
        %v526 = vpop.f32.mrb[0].mxu0
        %v527 = vpop.f32.mrb[0].mxu0
        %v528 = vpop.f32.mrb[0].mxu0
        %529 = vdwg.mxu0
        %v530 = vpack.c.bf16 %v484, %v484
        %v531 = vpack.c.bf16 %v486, %v486
        %v532 = vpack.c.bf16 %v525, %v525
        %v536 = vunpack.c.l.b16 %v530
        %v537 = vunpack.c.l.b16 %v531
        %v538 = vunpack.c.l.b16 %v532
        %v539 = vpack.c.b16 %v537, %v536
        %v540 = vpack.c.b16 %v538, %v538
        %543 = vst [vmem:[%s244] sm:$0xff] %v539
        %544 = vst [vmem:[%s244 + $0x8] sm:$0xf] %v540
        %s545 = sand.u32 %s135, 1
        %s546 = scalar_lea.sflag [#allocation4], %s545
        %s547 = sand.u32 %s135, 1
        %s548 = smul.addr %s547, 12
        %s549 = scalar_lea.vmem [#allocation7], %s548
        // Predicated region
        $region45: #{tpu_custom_call.1} parent=35 // pred_check
          %p550 = pneg %p145
        $region46: #{tpu_custom_call.1} parent=35 // pred_check_branch
          %552 = sbr.rel (%p550) target = $region48
        $region47: #{tpu_custom_call.1} parent=35 // pred_region
          %s554 = ssub.s32 192, 192
          %555 = vsyncadd %s546, %s554
          %s556 = smul.addr %s27, 3
          %s557 = smul.addr %s26, 3
          %s558 = sadd.s32 %s556, %s557
          %s559 = smul.addr %s558, 64
          %s560 = scalar_lea.hbm %s4, %s559
          %s562 = sshll.u32 %s549, 4
          %s563 = int_to_ptr.vmem [resolvable:$true] %s562
          %565 = dma.vmem_to_hbm [thread:$0]  %s563, 192, %s560, %s546
        $region48: #{tpu_custom_call.1} parent=35 // pred_fallthru
          _
      $region36: #{tpu_custom_call.1} parent=5 // pred_fallthru
        _
      %p566 = scmp.le.s32.totalorder 2, %s17
      // Predicated region
      $region49: #{tpu_custom_call.1} parent=5 // pred_check
        %p567 = pneg %p566
      $region50: #{tpu_custom_call.1} parent=5 // pred_check_branch
        %569 = sbr.rel (%p567) target = $region52
      $region51: #{tpu_custom_call.1} parent=5 // pred_region
        %s570 = ssub.s32 %s17, 2
        // Predicated region
        $region53: #{tpu_custom_call.1} parent=51 // pred_check
          %p571 = pneg %p151
        $region54: #{tpu_custom_call.1} parent=51 // pred_check_branch
          %573 = sbr.rel (%p571) target = $region56
        $region55: #{tpu_custom_call.1} parent=51 // pred_region
          %s574 = sand.u32 %s136, 1
          %s575 = scalar_lea.sflag [#allocation4], %s574
          %s576 = sand.u32 %s136, 1
          %s577 = smul.addr %s576, 12
          %s578 = scalar_lea.vmem [#allocation7], %s577
          %579 = dma.done %s575, 192
        $region56: #{tpu_custom_call.1} parent=51 // pred_fallthru
          _
      $region52: #{tpu_custom_call.1} parent=5 // pred_fallthru
        _
    $region6: #{tpu_custom_call.1} parent=1 // loop_footer
      %s21 = sadd.s32 1, %s17
    $region7: #{tpu_custom_call.1} parent=1 // loop_footer_branch
      %16 = sbr.rel target = $region3
    $region8: #{tpu_custom_call.1} parent=1 // loop_exit
      _
    %580 = vsyncpa [#allocation3], 1
    %s581 = scalar_lea.sflag [#allocation3], 1
    %582 = vsyncpa %s581, 1
    %583 = vsyncpa [#allocation6], 1
    %584 = vsyncpa [#allocation4], 1
    %s585 = scalar_lea.sflag [#allocation4], 1
    %586 = vsyncpa %s585, 1

</llo_original>
